<compile_context>
chip_gen: v6e
topology: v6e:2x2x1
jax: 0.10.0
libtpu: 0.0.40
codegen_flags: <defaults>
</compile_context>

<pallas_src>
import jax
import jax.numpy as jnp
from jax.experimental import pallas as pl
from jax.experimental.pallas import tpu as pltpu


_LANES = 512            # multiple of 128 (lane width) and of 4 (channels)
_MAX_TILE_ROWS = 1024   # 1024 * 512 * 4 B = 2 MiB per block


def _der_head_kernel(x_ref, o_ref):
    x = x_ref[...]                                       # (tile_rows, 512) f32
    # Numerically stable softplus: max(x, 0) + log1p(exp(-|x|))
    sp = jnp.maximum(x, 0.0) + jnp.log1p(jnp.exp(-jnp.abs(x)))
    # Row-major flattening of (b, 4): element channel == lane index % 4
    # (valid because the lane width is a multiple of 4).
    ch = jax.lax.broadcasted_iota(jnp.int32, x.shape, dimension=1) % 4
    # ch 0 -> identity (gamma), ch 2 -> softplus + 1 (alpha), ch 1/3 -> softplus
    out = jnp.where(ch == 0, x, jnp.where(ch == 2, sp + 1.0, sp))
    o_ref[...] = out.astype(o_ref.dtype)


def der_head(x: jax.Array) -> jax.Array:
    """x: (b, 4) float32 -> (b, 4) float32 with [gamma, nu, alpha, beta]."""
    assert x.ndim == 2 and x.shape[1] == 4, f"expected (b, 4), got {x.shape}"
    b = x.shape[0]
    n = b * 4

    # Flatten row-major and pad up to a full (rows, _LANES) slab where
    # rows is a multiple of the tile height (so there are no remainder blocks
    # and every store is a full-width unmasked vst).
    rows = pl.cdiv(n, _LANES)
    rows = max(((rows + 7) // 8) * 8, 8)                 # sublane-aligned
    tile_rows = min(_MAX_TILE_ROWS, rows)
    rows = ((rows + tile_rows - 1) // tile_rows) * tile_rows
    padded = rows * _LANES

    flat = x.reshape(n)
    if padded != n:
        flat = jnp.pad(flat, (0, padded - n))
    slab = flat.reshape(rows, _LANES)

    grid = (rows // tile_rows,)
    out_slab = pl.pallas_call(
        _der_head_kernel,
        out_shape=jax.ShapeDtypeStruct((rows, _LANES), x.dtype),
        grid=grid,
        in_specs=[pl.BlockSpec((tile_rows, _LANES), lambda i: (i, 0))],
        out_specs=pl.BlockSpec((tile_rows, _LANES), lambda i: (i, 0)),
        compiler_params=pltpu.CompilerParams(
            dimension_semantics=("parallel",)),
    )(slab)

    return out_slab.reshape(-1)[:n].reshape(b, 4)


def _der_head_ref(x: jnp.ndarray) -> jnp.ndarray:
    """Pure-JAX reference mirroring the PyTorch forward."""
    gamma = x[:, 0:1]
    nu = jax.nn.softplus(x[:, 1:2])
    alpha = jax.nn.softplus(x[:, 2:3]) + 1.0
    beta = jax.nn.softplus(x[:, 3:4])
    return jnp.concatenate((gamma, nu, alpha, beta), axis=1)


if __name__ == "__main__":
    key = jax.random.PRNGKey(0)

    # Small shape consistent with the module's (b, 4) input.
    b = 8
    x = jax.random.normal(key, (b, 4), dtype=jnp.float32) * 3.0
    out = jax.block_until_ready(der_head(x))
    ref = _der_head_ref(x)
    assert out.shape == (b, 4)
    assert jnp.allclose(out, ref, atol=1e-5, rtol=1e-5), (out, ref)

    # A larger batch to exercise the tiled / multi-block path.
    b2 = 200_000
    x2 = jax.random.normal(jax.random.PRNGKey(1), (b2, 4), jnp.float32) * 3.0
    out2 = jax.block_until_ready(der_head(x2))
    ref2 = _der_head_ref(x2)
    assert out2.shape == (b2, 4)
    assert jnp.allclose(out2, ref2, atol=1e-5, rtol=1e-5)

    print("KERNEL_OK")
</pallas_src>

<mosaic_0001>
module attributes {stable_mosaic.version = 11 : i64} {
  func.func @_der_head_kernel(%arg0: i32, %arg1: memref<8x512xf32, #tpu.memory_space<vmem>>, %arg2: memref<8x512xf32, #tpu.memory_space<vmem>>) attributes {dimension_semantics = [#tpu.dimension_semantics<parallel>], iteration_bounds = array<i64: 1>, scalar_prefetch = 0 : i64, scratch_operands = 0 : i64, tpu.core_type = #tpu.core_type<tc>, window_params = [{transform_indices = @transform_0, window_bounds = array<i64: 8, 512>}, {transform_indices = @transform_1, window_bounds = array<i64: 8, 512>}]} {
    %c0 = arith.constant 0 : index
    %c0_0 = arith.constant 0 : index
    %0 = vector.load %arg1[%c0, %c0_0] : memref<8x512xf32, #tpu.memory_space<vmem>>, vector<8x512xf32>
    %cst = arith.constant 0.000000e+00 : f32
    %1 = vector.broadcast %cst : f32 to vector<8x512xf32>
    %2 = arith.maximumf %0, %1 : vector<8x512xf32>
    %3 = math.absf %0 : vector<8x512xf32>
    %cst_1 = arith.constant 0.000000e+00 : f32
    %4 = vector.broadcast %cst_1 : f32 to vector<8x512xf32>
    %5 = arith.subf %4, %3 : vector<8x512xf32>
    %6 = math.exp %5 : vector<8x512xf32>
    %7 = math.log1p %6 : vector<8x512xf32>
    %8 = arith.addf %2, %7 : vector<8x512xf32>
    %9 = tpu.iota {dimensions = array<i32: 1>} : vector<8x512xi32>
    %c4_i32 = arith.constant 4 : i32
    %c0_i32 = arith.constant 0 : i32
    %10 = arith.cmpi eq, %c4_i32, %c0_i32 : i32
    %c1_i32 = arith.constant 1 : i32
    %11 = arith.select %10, %c1_i32, %c4_i32 : i32
    %12 = vector.broadcast %11 : i32 to vector<8x512xi32>
    %13 = arith.remsi %9, %12 : vector<8x512xi32>
    %c0_i32_2 = arith.constant 0 : i32
    %14 = vector.broadcast %c0_i32_2 : i32 to vector<8x512xi32>
    %15 = arith.cmpi ne, %13, %14 : vector<8x512xi32>
    %c0_i32_3 = arith.constant 0 : i32
    %16 = vector.broadcast %c0_i32_3 : i32 to vector<8x512xi32>
    %17 = arith.cmpi slt, %13, %16 : vector<8x512xi32>
    %c0_i32_4 = arith.constant 0 : i32
    %18 = arith.cmpi slt, %11, %c0_i32_4 : i32
    %19 = vector.broadcast %18 : i1 to vector<8x512xi1>
    %20 = vector.broadcast %19 : vector<8x512xi1> to vector<8x512xi1>
    %21 = arith.xori %17, %20 : vector<8x512xi1>
    %22 = arith.andi %21, %15 : vector<8x512xi1>
    %23 = vector.broadcast %11 : i32 to vector<8x512xi32>
    %24 = arith.addi %13, %23 : vector<8x512xi32>
    %25 = arith.select %22, %24, %13 : vector<8x512xi1>, vector<8x512xi32>
    %c0_i32_5 = arith.constant 0 : i32
    %26 = vector.broadcast %c0_i32_5 : i32 to vector<8x512xi32>
    %27 = arith.cmpi eq, %25, %26 : vector<8x512xi32>
    %c2_i32 = arith.constant 2 : i32
    %28 = vector.broadcast %c2_i32 : i32 to vector<8x512xi32>
    %29 = arith.cmpi eq, %25, %28 : vector<8x512xi32>
    %cst_6 = arith.constant 1.000000e+00 : f32
    %30 = vector.broadcast %cst_6 : f32 to vector<8x512xf32>
    %31 = arith.addf %8, %30 : vector<8x512xf32>
    %32 = arith.select %29, %31, %8 : vector<8x512xi1>, vector<8x512xf32>
    %33 = arith.select %27, %0, %32 : vector<8x512xi1>, vector<8x512xf32>
    %c0_7 = arith.constant 0 : index
    %c0_8 = arith.constant 0 : index
    %34 = vector.load %arg2[%c0_7, %c0_8] : memref<8x512xf32, #tpu.memory_space<vmem>>, vector<8x512xf32>
    tpu.vector_store %arg2[%c0_7, %c0_8], %33 {strides = array<i32>} : memref<8x512xf32, #tpu.memory_space<vmem>>, vector<8x512xf32>,
    return
  }
  func.func @transform_0(%arg0: i32) -> (i32, i32) {
    %c0_i32 = arith.constant 0 : i32
    %c0_i32_0 = arith.constant 0 : i32
    return %arg0, %c0_i32 : i32, i32
  }
  func.func @transform_1(%arg0: i32) -> (i32, i32) {
    %c0_i32 = arith.constant 0 : i32
    %c0_i32_0 = arith.constant 0 : i32
    return %arg0, %c0_i32 : i32, i32
  }
}

</mosaic_0001>

<llo_original>
// kernel: tpu_custom_call.1
$region0: #{tpu_custom_call.1}
  #allocation0 [shape = 'u32[]', space=smem, size = 0x4, offset = 0x4, fixed_abs, tag = 'smem constant byte address 0x4 - core index']
  #allocation1 [shape = 'u32[144,128]{1,0:T(1,128)}', space=vmem, size = 0x12000, scoped, tag = 'internal scratch']
  %s0 = inlined_call_operand.hbm [shape: f32[8,512], index: 0, kind: input, shape index: {}]
  %s1 = inlined_call_operand.hbm [shape: f32[8,512], index: 1, kind: output, shape index: {}]
  %s2 = sld [smem:[#allocation0]]
  $region18: #{tpu_custom_call.1} parent=0
    _
  %s4 = ssub.s32 1, %s2
  %s5 = scalar_select 0, %s4, %s2
  $region1: #{tpu_custom_call.1} parent=0
    #allocation2 [shape = 'u8[16384]{0}', space=vmem, size = 0x4000, scoped, tag = 'input window, operand 0, single buffered']
    #allocation3 [shape = 's32[1]{0}', space=sflag, size = 0x4, scoped, tag = 'scoped memory for tpu_custom_call.1']
    #allocation4 [shape = 's32[1]{0}', space=sflag, size = 0x4, scoped, tag = 'scoped memory for tpu_custom_call.1']
    #allocation5 [shape = 'u8[16384]{0}', space=vmem, size = 0x4000, scoped, tag = 'output window, operand 0, single buffered']
    %6 = vsyncpa [#allocation3], 0
    %7 = vsyncpa [#allocation4], 0
    // Predicated region
    $region2: #{tpu_custom_call.1} parent=1 // pred_check
      _
    $region3: #{tpu_custom_call.1} parent=1 // pred_check_branch
      %9 = sbr.rel (0) target = $region5
    $region4: #{tpu_custom_call.1} parent=1 // pred_region
      %s11 = ssub.s32 512, 512
      %12 = vsyncadd [#allocation3], %s11
      %s14 = sshll.u32 [#allocation2], 4
      %s15 = int_to_ptr.vmem [resolvable:$true] %s14
      %17 = dma.hbm_to_vmem [thread:$0]  %s0, 512, %s15, [#allocation3]
    $region5: #{tpu_custom_call.1} parent=1 // pred_fallthru
      _
    // Predicated region
    $region6: #{tpu_custom_call.1} parent=1 // pred_check
      _
    $region7: #{tpu_custom_call.1} parent=1 // pred_check_branch
      %19 = sbr.rel (0) target = $region9
    $region8: #{tpu_custom_call.1} parent=1 // pred_region
      %20 = dma.done [#allocation3], 512
    $region9: #{tpu_custom_call.1} parent=1 // pred_fallthru
      _
    %v21 = vld [vmem:[#allocation2] sm:$0xff]
    %v22 = vld [vmem:[#allocation2 + $0x8] sm:$0xff]
    %v23 = vld [vmem:[#allocation2 + $0x10] sm:$0xff]
    %v24 = vld [vmem:[#allocation2 + $0x18] sm:$0xff]
    %v25 = vmax.f32 %v21, 0.0
    %v26 = vmax.f32 %v22, 0.0
    %v27 = vmax.f32 %v23, 0.0
    %v28 = vmax.f32 %v24, 0.0
    %v29 = vand.u32 2147483647, %v21
    %v30 = vand.u32 2147483647, %v22
    %v31 = vand.u32 2147483647, %v23
    %v32 = vand.u32 2147483647, %v24
    %v33 = vsub.f32 0.0, %v29
    %v34 = vsub.f32 0.0, %v30
    %v35 = vsub.f32 0.0, %v31
    %v36 = vsub.f32 0.0, %v32
    %v37 = vmul.f32 %v33, 1.442695
    %v38 = vpow.pop %v37
    %v39 = vmul.f32 %v34, 1.442695
    %v40 = vpow.pop %v39
    %v41 = vmul.f32 %v35, 1.442695
    %v42 = vpow.pop %v41
    %v43 = vmul.f32 %v36, 1.442695
    %v44 = vpow.pop %v43
    %v45 = vadd.f32 %v38, 1.0
    %v46 = vlog2.pop %v45
    %v47 = vmul.f32 %v46, 0.6931472
    %v48 = vmul.f32 -0.5, %v38
    %v49 = vadd.f32 %v48, 1.0
    %v50 = vmul.f32 %v49, %v38
    %v51 = vand.u32 2147483647, %v38
    %vm52 = vcmp.lt.f32.partialorder %v51, 0.0004427343
    %v53 = vsel %vm52, %v50, %v47
    %v54 = vadd.f32 %v40, 1.0
    %v55 = vlog2.pop %v54
    %v56 = vmul.f32 %v55, 0.6931472
    %v57 = vmul.f32 -0.5, %v40
    %v58 = vadd.f32 %v57, 1.0
    %v59 = vmul.f32 %v58, %v40
    %v60 = vand.u32 2147483647, %v40
    %vm61 = vcmp.lt.f32.partialorder %v60, 0.0004427343
    %v62 = vsel %vm61, %v59, %v56
    %v63 = vadd.f32 %v42, 1.0
    %v64 = vlog2.pop %v63
    %v65 = vmul.f32 %v64, 0.6931472
    %v66 = vmul.f32 -0.5, %v42
    %v67 = vadd.f32 %v66, 1.0
    %v68 = vmul.f32 %v67, %v42
    %v69 = vand.u32 2147483647, %v42
    %vm70 = vcmp.lt.f32.partialorder %v69, 0.0004427343
    %v71 = vsel %vm70, %v68, %v65
    %v72 = vadd.f32 %v44, 1.0
    %v73 = vlog2.pop %v72
    %v74 = vmul.f32 %v73, 0.6931472
    %v75 = vmul.f32 -0.5, %v44
    %v76 = vadd.f32 %v75, 1.0
    %v77 = vmul.f32 %v76, %v44
    %v78 = vand.u32 2147483647, %v44
    %vm79 = vcmp.lt.f32.partialorder %v78, 0.0004427343
    %v80 = vsel %vm79, %v77, %v74
    %v81 = vadd.f32 %v25, %v53
    %v82 = vadd.f32 %v26, %v62
    %v83 = vadd.f32 %v27, %v71
    %v84 = vadd.f32 %v28, %v80
    %v85 = vlaneseq
    %v86 = vand.u32 %v85, 127
    %v87 = vadd.s32 %v86, 128
    %v88 = vadd.s32 %v86, 256
    %v89 = vadd.s32 %v86, 384
    %vm90 = vcmp.lt.s32.totalorder %v86, 0
    %v91 = vsub.s32 0, %v86
    %v92 = vsel %vm90, %v91, %v86
    %v93 = vshrl.u32 %v92, 2
    %v94 = vand.u32 %v92, 3
    %v95 = vsub.s32 0, %v94
    %v96 = vsel %vm90, %v95, %v94
    %vm97 = vcmp.lt.s32.totalorder %v87, 0
    %v98 = vsub.s32 0, %v87
    %v99 = vsel %vm97, %v98, %v87
    %v100 = vshrl.u32 %v99, 2
    %v101 = vand.u32 %v99, 3
    %v102 = vsub.s32 0, %v101
    %v103 = vsel %vm97, %v102, %v101
    %vm104 = vcmp.lt.s32.totalorder %v88, 0
    %v105 = vsub.s32 0, %v88
    %v106 = vsel %vm104, %v105, %v88
    %v107 = vshrl.u32 %v106, 2
    %v108 = vand.u32 %v106, 3
    %v109 = vsub.s32 0, %v108
    %v110 = vsel %vm104, %v109, %v108
    %vm111 = vcmp.lt.s32.totalorder %v89, 0
    %v112 = vsub.s32 0, %v89
    %v113 = vsel %vm111, %v112, %v89
    %v114 = vshrl.u32 %v113, 2
    %v115 = vand.u32 %v113, 3
    %v116 = vsub.s32 0, %v115
    %v117 = vsel %vm111, %v116, %v115
    %vm118 = vcmp.ne.s32.totalorder %v96, 0
    %vm119 = vcmp.ne.s32.totalorder %v103, 0
    %vm120 = vcmp.ne.s32.totalorder %v110, 0
    %vm121 = vcmp.ne.s32.totalorder %v117, 0
    %vm122 = vcmp.lt.s32.totalorder %v96, 0
    %vm123 = vcmp.lt.s32.totalorder %v103, 0
    %vm124 = vcmp.lt.s32.totalorder %v110, 0
    %vm125 = vcmp.lt.s32.totalorder %v117, 0
    %vm126 = vmand %vm122, %vm118
    %vm127 = vmand %vm123, %vm119
    %vm128 = vmand %vm124, %vm120
    %vm129 = vmand %vm125, %vm121
    %v130 = vadd.s32 %v96, 4
    %v131 = vadd.s32 %v103, 4
    %v132 = vadd.s32 %v110, 4
    %v133 = vadd.s32 %v117, 4
    %v134 = vsel %vm126, %v130, %v96
    %v135 = vsel %vm127, %v131, %v103
    %v136 = vsel %vm128, %v132, %v110
    %v137 = vsel %vm129, %v133, %v117
    %vm138 = vcmp.eq.s32.totalorder %v134, 0
    %vm139 = vcmp.eq.s32.totalorder %v135, 0
    %vm140 = vcmp.eq.s32.totalorder %v136, 0
    %vm141 = vcmp.eq.s32.totalorder %v137, 0
    %vm142 = vcmp.eq.s32.totalorder %v134, 2
    %vm143 = vcmp.eq.s32.totalorder %v135, 2
    %vm144 = vcmp.eq.s32.totalorder %v136, 2
    %vm145 = vcmp.eq.s32.totalorder %v137, 2
    %v146 = vadd.f32 %v81, 1.0
    %v147 = vadd.f32 %v82, 1.0
    %v148 = vadd.f32 %v83, 1.0
    %v149 = vadd.f32 %v84, 1.0
    %v150 = vsel %vm142, %v146, %v81
    %v151 = vsel %vm143, %v147, %v82
    %v152 = vsel %vm144, %v148, %v83
    %v153 = vsel %vm145, %v149, %v84
    %v154 = vsel %vm138, %v21, %v150
    %v155 = vsel %vm139, %v22, %v151
    %v156 = vsel %vm140, %v23, %v152
    %v157 = vsel %vm141, %v24, %v153
    %158 = vst [vmem:[#allocation5] sm:$0xff] %v154
    %159 = vst [vmem:[#allocation5 + $0x8] sm:$0xff] %v155
    %160 = vst [vmem:[#allocation5 + $0x10] sm:$0xff] %v156
    %161 = vst [vmem:[#allocation5 + $0x18] sm:$0xff] %v157
    // Predicated region
    $region10: #{tpu_custom_call.1} parent=1 // pred_check
      _
    $region11: #{tpu_custom_call.1} parent=1 // pred_check_branch
      %163 = sbr.rel (0) target = $region13
    $region12: #{tpu_custom_call.1} parent=1 // pred_region
      %s165 = ssub.s32 512, 512
      %166 = vsyncadd [#allocation4], %s165
      %s168 = sshll.u32 [#allocation5], 4
      %s169 = int_to_ptr.vmem [resolvable:$true] %s168
      %171 = dma.vmem_to_hbm [thread:$0]  %s169, 512, %s1, [#allocation4]
    $region13: #{tpu_custom_call.1} parent=1 // pred_fallthru
      _
    // Predicated region
    $region14: #{tpu_custom_call.1} parent=1 // pred_check
      _
    $region15: #{tpu_custom_call.1} parent=1 // pred_check_branch
      %173 = sbr.rel (0) target = $region17
    $region16: #{tpu_custom_call.1} parent=1 // pred_region
      %174 = dma.done [#allocation4], 512
    $region17: #{tpu_custom_call.1} parent=1 // pred_fallthru
      _
    %175 = vsyncpa [#allocation3], 1
    %176 = vsyncpa [#allocation4], 1

</llo_original>
